<compile_context>
chip_gen: v7x
topology: tpu7x:2x2x1
jax: 0.10.0
libtpu: 0.0.40
codegen_flags: <defaults>
</compile_context>

<pallas_src>
import jax
import jax.numpy as jnp
from jax.experimental import pallas as pl
from jax.experimental.pallas import tpu as pltpu

LATENT_DIM = 32
TARGET_DIM = 10          # the csv label slice has 10 columns
INPUT_DIM = LATENT_DIM + TARGET_DIM   # 42
IN_PAD = 64              # layer-1 K padded to 64 lanes (zero-padded -> exact)
HIDDEN1 = 128
HIDDEN2 = 256
OUT_DIM = 100
OUT_PAD = 128            # lane-dense padded output width
NEG_SLOPE = 0.01         # F.leaky_relu default


def _leaky_relu(x):
    return jnp.where(x > 0, x, NEG_SLOPE * x)


def _round_up(x, m):
    return (x + m - 1) // m * m


def _choose_tile(batch, tile_b_max):
    """Adaptive batch tile: >=2 grid steps when possible (v7x megacore),
    padding waste capped at <8 rows per tile, multiple of 8 sublanes."""
    n_steps = max(2, -(-batch // tile_b_max))
    tile_b = _round_up(-(-batch // n_steps), 8)
    return max(8, min(tile_b, tile_b_max))


def generator_kernel(x_ref,
                     w1_ref, b1_ref,
                     wa_ref, ba_ref,
                     wr1_ref, br1_ref,
                     wr2_ref, br2_ref,
                     wo_ref, bo_ref,
                     out_ref):
    f32 = jnp.float32
    bf16 = jnp.bfloat16

    x = x_ref[...].astype(bf16)                      # (tile_b, 64) fused [noise|target|0]

    # l1: Linear(input_dim, 128); concat already fused in the wrapper -> one matmul.
    h = jnp.dot(x, w1_ref[...], preferred_element_type=f32) + b1_ref[...]

    # Attention(128, 128): a = softmax(leaky_relu(W_a h + b_a), dim=1); h = h * a
    a = _leaky_relu(
        jnp.dot(h.astype(bf16), wa_ref[...], preferred_element_type=f32)
        + ba_ref[...])
    a = a - jnp.max(a, axis=1, keepdims=True)
    a_exp = jnp.exp(a)
    inv_den = pl.reciprocal(jnp.sum(a_exp, axis=1, keepdims=True), approx=True)
    h = h * (a_exp * inv_den)

    # ResidualBlock(128, 256)
    hb = h.astype(bf16)
    y = _leaky_relu(
        jnp.dot(hb, wr1_ref[...], preferred_element_type=f32) + br1_ref[...])
    z = jnp.dot(hb, wr2_ref[...], preferred_element_type=f32) + br2_ref[...]
    h2 = _leaky_relu(z + y)

    # Linear(256, 100->128 padded) + ReLU; lane-dense unmasked store.
    o = (jnp.dot(h2.astype(bf16), wo_ref[...], preferred_element_type=f32)
         + bo_ref[...])
    out_ref[...] = jnp.maximum(o, 0.0)


def generator_forward(noise, target, params, *, tile_b_max=2048):
    B = noise.shape[0]
    noise = noise.astype(jnp.float32)
    target = target.astype(jnp.float32)

    # Adaptive batch tiling (>=2 grid steps when possible, minimal padding).
    tile_b = _choose_tile(B, tile_b_max)
    b_pad = _round_up(B, tile_b)

    # Fuse the concat in the wrapper and zero-pad K: 42 -> 64.
    x = jnp.concatenate([noise, target], axis=-1)            # (B, 42)
    x = jnp.pad(x, ((0, b_pad - B), (0, IN_PAD - INPUT_DIM)))  # (b_pad, 64)

    # Pad layer-1 weight rows to match (zero rows -> exact result) and the
    # final layer to a 128-wide lane-dense output.
    w1_p = jnp.pad(params["w1"], ((0, IN_PAD - INPUT_DIM), (0, 0)))
    wo_p = jnp.pad(params["wo"], ((0, 0), (0, OUT_PAD - OUT_DIM)))
    bo_p = jnp.pad(params["bo"], ((0, 0), (0, OUT_PAD - OUT_DIM)))

    weights = (w1_p, params["b1"],
               params["wa"], params["ba"],
               params["wr1"], params["br1"],
               params["wr2"], params["br2"],
               wo_p, bo_p)

    grid = (b_pad // tile_b,)

    def batch_spec(cols):
        return pl.BlockSpec((tile_b, cols), lambda i: (i, 0))

    def resident(arr):
        # constant index_map: block never changes -> stays VMEM-resident.
        return pl.BlockSpec(arr.shape, lambda i: (0, 0))

    # Advisory cost estimate so XLA schedules the surrounding pad/slice sanely.
    matmul_flops = 2 * b_pad * (IN_PAD * HIDDEN1
                                + HIDDEN1 * HIDDEN1
                                + 2 * HIDDEN1 * HIDDEN2
                                + HIDDEN2 * OUT_PAD)
    weight_bytes = sum(int(w.size) * w.dtype.itemsize for w in weights)
    cost = pl.CostEstimate(
        flops=matmul_flops,
        transcendentals=b_pad * (HIDDEN1 + 1),
        bytes_accessed=b_pad * (IN_PAD + OUT_PAD) * 4 + weight_bytes)

    out = pl.pallas_call(
        generator_kernel,
        out_shape=jax.ShapeDtypeStruct((b_pad, OUT_PAD), jnp.float32),
        grid=grid,
        in_specs=[batch_spec(IN_PAD)] + [resident(w) for w in weights],
        out_specs=batch_spec(OUT_PAD),
        compiler_params=pltpu.CompilerParams(
            dimension_semantics=("parallel",),
            # tile_b=2048: double-buffered in/out tiles + f32 intermediates
            # (h, a, h2, o) + ~0.25 MiB bf16 weights ~= 10 MiB/step; 32 MiB
            # gives headroom on every chip (v7x physical VMEM is 64 MiB).
            vmem_limit_bytes=32 << 20),
        cost_estimate=cost,
    )(x, *weights)

    return out[:B, :OUT_DIM]


def init_params(key):
    ks = jax.random.split(key, 10)

    def lin(kw, kb, fin, fout):
        # torch Linear default init: U(-1/sqrt(fin), 1/sqrt(fin)).
        # Weights kept in bf16 (MXU operands), biases in fp32.
        bound = 1.0 / (fin ** 0.5)
        w = jax.random.uniform(kw, (fin, fout), jnp.float32, -bound, bound)
        b = jax.random.uniform(kb, (1, fout), jnp.float32, -bound, bound)
        return w.astype(jnp.bfloat16), b

    w1, b1 = lin(ks[0], ks[1], INPUT_DIM, HIDDEN1)      # l1 (concat fused)
    wa, ba = lin(ks[2], ks[3], HIDDEN1, HIDDEN1)        # Attention.layer
    wr1, br1 = lin(ks[4], ks[5], HIDDEN1, HIDDEN2)      # ResidualBlock.layer1
    wr2, br2 = lin(ks[6], ks[7], HIDDEN1, HIDDEN2)      # ResidualBlock.layer2
    wo, bo = lin(ks[8], ks[9], HIDDEN2, OUT_DIM)        # final Linear(256,100)
    return dict(w1=w1, b1=b1,
                wa=wa, ba=ba, wr1=wr1, br1=br1, wr2=wr2, br2=br2,
                wo=wo, bo=bo)


def reference_forward(noise, target, p):
    # Pure-JAX reference with the same bf16-operand / fp32-accumulate matmuls.
    def mm(x, w):
        return jnp.dot(x.astype(jnp.bfloat16), w,
                       preferred_element_type=jnp.float32)

    gen_input = jnp.concatenate([noise, target], axis=-1)
    h = mm(gen_input, p["w1"]) + p["b1"]
    a = _leaky_relu(mm(h, p["wa"]) + p["ba"])
    a = a - jnp.max(a, axis=1, keepdims=True)
    a = jnp.exp(a)
    a = a / jnp.sum(a, axis=1, keepdims=True)
    h = h * a
    y = _leaky_relu(mm(h, p["wr1"]) + p["br1"])
    z = mm(h, p["wr2"]) + p["br2"]
    h2 = _leaky_relu(z + y)
    return jnp.maximum(mm(h2, p["wo"]) + p["bo"], 0.0)


if __name__ == "__main__":
    key = jax.random.PRNGKey(0)
    kp, kn, kt = jax.random.split(key, 3)

    B = 16
    params = init_params(kp)
    noise = jax.random.normal(kn, (B, LATENT_DIM), jnp.float32)
    # one-hot conditioning vector
    labels = jax.random.randint(kt, (B,), 0, TARGET_DIM)
    target = jax.nn.one_hot(labels, TARGET_DIM, dtype=jnp.float32)

    # Adaptive tiling picks tile_b=8 here -> a 2-step batch grid is exercised.
    out = generator_forward(noise, target, params)
    out = jax.block_until_ready(out)

    ref = reference_forward(noise, target, params)
    assert out.shape == (B, OUT_DIM)
    assert jnp.allclose(out, ref, atol=3e-3, rtol=2e-2), \
        float(jnp.max(jnp.abs(out - ref)))

    print("KERNEL_OK")
</pallas_src>

<mosaic_0001>
module attributes {stable_mosaic.version = 11 : i64} {
  func.func @generator_kernel(%arg0: i32, %arg1: memref<8x64xf32, #tpu.memory_space<vmem>>, %arg2: memref<64x128xbf16, #tpu.memory_space<vmem>>, %arg3: memref<1x128xf32, #tpu.memory_space<vmem>>, %arg4: memref<128x128xbf16, #tpu.memory_space<vmem>>, %arg5: memref<1x128xf32, #tpu.memory_space<vmem>>, %arg6: memref<128x256xbf16, #tpu.memory_space<vmem>>, %arg7: memref<1x256xf32, #tpu.memory_space<vmem>>, %arg8: memref<128x256xbf16, #tpu.memory_space<vmem>>, %arg9: memref<1x256xf32, #tpu.memory_space<vmem>>, %arg10: memref<256x128xbf16, #tpu.memory_space<vmem>>, %arg11: memref<1x128xf32, #tpu.memory_space<vmem>>, %arg12: memref<8x128xf32, #tpu.memory_space<vmem>>) attributes {dimension_semantics = [#tpu.dimension_semantics<parallel>], iteration_bounds = array<i64: 2>, scalar_prefetch = 0 : i64, scratch_operands = 0 : i64, tpu.core_type = #tpu.core_type<tc>, window_params = [{transform_indices = @transform_0, window_bounds = array<i64: 8, 64>}, {pipeline_mode = #tpu.pipeline_mode<synchronous>, transform_indices = @transform_1, window_bounds = array<i64: 64, 128>}, {pipeline_mode = #tpu.pipeline_mode<synchronous>, transform_indices = @transform_2, window_bounds = array<i64: 1, 128>}, {pipeline_mode = #tpu.pipeline_mode<synchronous>, transform_indices = @transform_3, window_bounds = array<i64: 128, 128>}, {pipeline_mode = #tpu.pipeline_mode<synchronous>, transform_indices = @transform_4, window_bounds = array<i64: 1, 128>}, {pipeline_mode = #tpu.pipeline_mode<synchronous>, transform_indices = @transform_5, window_bounds = array<i64: 128, 256>}, {pipeline_mode = #tpu.pipeline_mode<synchronous>, transform_indices = @transform_6, window_bounds = array<i64: 1, 256>}, {pipeline_mode = #tpu.pipeline_mode<synchronous>, transform_indices = @transform_7, window_bounds = array<i64: 128, 256>}, {pipeline_mode = #tpu.pipeline_mode<synchronous>, transform_indices = @transform_8, window_bounds = array<i64: 1, 256>}, {pipeline_mode = #tpu.pipeline_mode<synchronous>, transform_indices = @transform_9, window_bounds = array<i64: 256, 128>}, {pipeline_mode = #tpu.pipeline_mode<synchronous>, transform_indices = @transform_10, window_bounds = array<i64: 1, 128>}, {transform_indices = @transform_11, window_bounds = array<i64: 8, 128>}]} {
    %c0 = arith.constant 0 : index
    %c0_0 = arith.constant 0 : index
    %0 = vector.load %arg1[%c0, %c0_0] : memref<8x64xf32, #tpu.memory_space<vmem>>, vector<8x64xf32>
    %1 = arith.truncf %0 : vector<8x64xf32> to vector<8x64xbf16>
    %c0_1 = arith.constant 0 : index
    %c0_2 = arith.constant 0 : index
    %2 = vector.load %arg2[%c0_1, %c0_2] : memref<64x128xbf16, #tpu.memory_space<vmem>>, vector<64x128xbf16>
    %cst = arith.constant dense<0.000000e+00> : vector<8x128xf32>
    %3 = tpu.matmul %1, %2, %cst {dimension_numbers = #tpu.dot_dimension_numbers<[1], [0], [0], [1], [0, 0, 1, 1], [], []>} : vector<8x64xbf16>, vector<64x128xbf16>, vector<8x128xf32> -> vector<8x128xf32>
    %c0_3 = arith.constant 0 : index
    %c0_4 = arith.constant 0 : index
    %4 = vector.load %arg3[%c0_3, %c0_4] : memref<1x128xf32, #tpu.memory_space<vmem>>, vector<1x128xf32>
    %5 = vector.broadcast %4 : vector<1x128xf32> to vector<8x128xf32>
    %6 = arith.addf %3, %5 : vector<8x128xf32>
    %7 = arith.truncf %6 : vector<8x128xf32> to vector<8x128xbf16>
    %c0_5 = arith.constant 0 : index
    %c0_6 = arith.constant 0 : index
    %8 = vector.load %arg4[%c0_5, %c0_6] : memref<128x128xbf16, #tpu.memory_space<vmem>>, vector<128x128xbf16>
    %cst_7 = arith.constant dense<0.000000e+00> : vector<8x128xf32>
    %9 = tpu.matmul %7, %8, %cst_7 {dimension_numbers = #tpu.dot_dimension_numbers<[1], [0], [0], [1], [0, 0, 1, 1], [], []>} : vector<8x128xbf16>, vector<128x128xbf16>, vector<8x128xf32> -> vector<8x128xf32>
    %c0_8 = arith.constant 0 : index
    %c0_9 = arith.constant 0 : index
    %10 = vector.load %arg5[%c0_8, %c0_9] : memref<1x128xf32, #tpu.memory_space<vmem>>, vector<1x128xf32>
    %11 = vector.broadcast %10 : vector<1x128xf32> to vector<8x128xf32>
    %12 = arith.addf %9, %11 : vector<8x128xf32>
    %cst_10 = arith.constant 0.000000e+00 : f32
    %13 = vector.broadcast %cst_10 : f32 to vector<8x128xf32>
    %14 = arith.cmpf ogt, %12, %13 : vector<8x128xf32>
    %cst_11 = arith.constant 0.00999999977 : f32
    %15 = vector.broadcast %cst_11 : f32 to vector<8x128xf32>
    %16 = arith.mulf %15, %12 : vector<8x128xf32>
    %17 = arith.select %14, %12, %16 : vector<8x128xi1>, vector<8x128xf32>
    %cst_12 = arith.constant dense<0xFF800000> : vector<8xf32>
    %18 = vector.multi_reduction <maximumf>, %17, %cst_12 [1] : vector<8x128xf32> to vector<8xf32>
    %19 = vector.shape_cast %18 : vector<8xf32> to vector<8x1xf32>
    %20 = vector.broadcast %19 : vector<8x1xf32> to vector<8x128xf32>
    %21 = arith.subf %17, %20 : vector<8x128xf32>
    %22 = math.exp %21 : vector<8x128xf32>
    %cst_13 = arith.constant dense<0.000000e+00> : vector<8xf32>
    %23 = vector.multi_reduction <add>, %22, %cst_13 [1] : vector<8x128xf32> to vector<8xf32>
    %24 = vector.shape_cast %23 : vector<8xf32> to vector<8x1xf32>
    %25 = tpu.reciprocal %24 {approx = true} : vector<8x1xf32> -> vector<8x1xf32>
    %26 = vector.broadcast %25 : vector<8x1xf32> to vector<8x128xf32>
    %27 = arith.mulf %22, %26 : vector<8x128xf32>
    %28 = arith.mulf %6, %27 : vector<8x128xf32>
    %29 = arith.truncf %28 : vector<8x128xf32> to vector<8x128xbf16>
    %c0_14 = arith.constant 0 : index
    %c0_15 = arith.constant 0 : index
    %30 = vector.load %arg6[%c0_14, %c0_15] : memref<128x256xbf16, #tpu.memory_space<vmem>>, vector<128x256xbf16>
    %cst_16 = arith.constant dense<0.000000e+00> : vector<8x256xf32>
    %31 = tpu.matmul %29, %30, %cst_16 {dimension_numbers = #tpu.dot_dimension_numbers<[1], [0], [0], [1], [0, 0, 1, 1], [], []>} : vector<8x128xbf16>, vector<128x256xbf16>, vector<8x256xf32> -> vector<8x256xf32>
    %c0_17 = arith.constant 0 : index
    %c0_18 = arith.constant 0 : index
    %32 = vector.load %arg7[%c0_17, %c0_18] : memref<1x256xf32, #tpu.memory_space<vmem>>, vector<1x256xf32>
    %33 = vector.broadcast %32 : vector<1x256xf32> to vector<8x256xf32>
    %34 = arith.addf %31, %33 : vector<8x256xf32>
    %cst_19 = arith.constant 0.000000e+00 : f32
    %35 = vector.broadcast %cst_19 : f32 to vector<8x256xf32>
    %36 = arith.cmpf ogt, %34, %35 : vector<8x256xf32>
    %cst_20 = arith.constant 0.00999999977 : f32
    %37 = vector.broadcast %cst_20 : f32 to vector<8x256xf32>
    %38 = arith.mulf %37, %34 : vector<8x256xf32>
    %39 = arith.select %36, %34, %38 : vector<8x256xi1>, vector<8x256xf32>
    %c0_21 = arith.constant 0 : index
    %c0_22 = arith.constant 0 : index
    %40 = vector.load %arg8[%c0_21, %c0_22] : memref<128x256xbf16, #tpu.memory_space<vmem>>, vector<128x256xbf16>
    %cst_23 = arith.constant dense<0.000000e+00> : vector<8x256xf32>
    %41 = tpu.matmul %29, %40, %cst_23 {dimension_numbers = #tpu.dot_dimension_numbers<[1], [0], [0], [1], [0, 0, 1, 1], [], []>} : vector<8x128xbf16>, vector<128x256xbf16>, vector<8x256xf32> -> vector<8x256xf32>
    %c0_24 = arith.constant 0 : index
    %c0_25 = arith.constant 0 : index
    %42 = vector.load %arg9[%c0_24, %c0_25] : memref<1x256xf32, #tpu.memory_space<vmem>>, vector<1x256xf32>
    %43 = vector.broadcast %42 : vector<1x256xf32> to vector<8x256xf32>
    %44 = arith.addf %41, %43 : vector<8x256xf32>
    %45 = arith.addf %44, %39 : vector<8x256xf32>
    %cst_26 = arith.constant 0.000000e+00 : f32
    %46 = vector.broadcast %cst_26 : f32 to vector<8x256xf32>
    %47 = arith.cmpf ogt, %45, %46 : vector<8x256xf32>
    %cst_27 = arith.constant 0.00999999977 : f32
    %48 = vector.broadcast %cst_27 : f32 to vector<8x256xf32>
    %49 = arith.mulf %48, %45 : vector<8x256xf32>
    %50 = arith.select %47, %45, %49 : vector<8x256xi1>, vector<8x256xf32>
    %51 = arith.truncf %50 : vector<8x256xf32> to vector<8x256xbf16>
    %c0_28 = arith.constant 0 : index
    %c0_29 = arith.constant 0 : index
    %52 = vector.load %arg10[%c0_28, %c0_29] : memref<256x128xbf16, #tpu.memory_space<vmem>>, vector<256x128xbf16>
    %cst_30 = arith.constant dense<0.000000e+00> : vector<8x128xf32>
    %53 = tpu.matmul %51, %52, %cst_30 {dimension_numbers = #tpu.dot_dimension_numbers<[1], [0], [0], [1], [0, 0, 1, 1], [], []>} : vector<8x256xbf16>, vector<256x128xbf16>, vector<8x128xf32> -> vector<8x128xf32>
    %c0_31 = arith.constant 0 : index
    %c0_32 = arith.constant 0 : index
    %54 = vector.load %arg11[%c0_31, %c0_32] : memref<1x128xf32, #tpu.memory_space<vmem>>, vector<1x128xf32>
    %55 = vector.broadcast %54 : vector<1x128xf32> to vector<8x128xf32>
    %56 = arith.addf %53, %55 : vector<8x128xf32>
    %cst_33 = arith.constant 0.000000e+00 : f32
    %57 = vector.broadcast %cst_33 : f32 to vector<8x128xf32>
    %58 = arith.maximumf %56, %57 : vector<8x128xf32>
    %c0_34 = arith.constant 0 : index
    %c0_35 = arith.constant 0 : index
    %59 = vector.load %arg12[%c0_34, %c0_35] : memref<8x128xf32, #tpu.memory_space<vmem>>, vector<8x128xf32>
    tpu.vector_store %arg12[%c0_34, %c0_35], %58 {strides = array<i32>} : memref<8x128xf32, #tpu.memory_space<vmem>>, vector<8x128xf32>,
    return
  }
  func.func @transform_0(%arg0: i32) -> (i32, i32) {
    %c0_i32 = arith.constant 0 : i32
    %c0_i32_0 = arith.constant 0 : i32
    return %arg0, %c0_i32 : i32, i32
  }
  func.func @transform_1(%arg0: i32) -> (i32, i32) {
    %c0_i32 = arith.constant 0 : i32
    %c0_i32_0 = arith.constant 0 : i32
    %c0_i32_1 = arith.constant 0 : i32
    return %c0_i32, %c0_i32_0 : i32, i32
  }
  func.func @transform_2(%arg0: i32) -> (i32, i32) {
    %c0_i32 = arith.constant 0 : i32
    %c0_i32_0 = arith.constant 0 : i32
    %c0_i32_1 = arith.constant 0 : i32
    return %c0_i32, %c0_i32_0 : i32, i32
  }
  func.func @transform_3(%arg0: i32) -> (i32, i32) {
    %c0_i32 = arith.constant 0 : i32
    %c0_i32_0 = arith.constant 0 : i32
    %c0_i32_1 = arith.constant 0 : i32
    return %c0_i32, %c0_i32_0 : i32, i32
  }
  func.func @transform_4(%arg0: i32) -> (i32, i32) {
    %c0_i32 = arith.constant 0 : i32
    %c0_i32_0 = arith.constant 0 : i32
    %c0_i32_1 = arith.constant 0 : i32
    return %c0_i32, %c0_i32_0 : i32, i32
  }
  func.func @transform_5(%arg0: i32) -> (i32, i32) {
    %c0_i32 = arith.constant 0 : i32
    %c0_i32_0 = arith.constant 0 : i32
    %c0_i32_1 = arith.constant 0 : i32
    return %c0_i32, %c0_i32_0 : i32, i32
  }
  func.func @transform_6(%arg0: i32) -> (i32, i32) {
    %c0_i32 = arith.constant 0 : i32
    %c0_i32_0 = arith.constant 0 : i32
    %c0_i32_1 = arith.constant 0 : i32
    return %c0_i32, %c0_i32_0 : i32, i32
  }
  func.func @transform_7(%arg0: i32) -> (i32, i32) {
    %c0_i32 = arith.constant 0 : i32
    %c0_i32_0 = arith.constant 0 : i32
    %c0_i32_1 = arith.constant 0 : i32
    return %c0_i32, %c0_i32_0 : i32, i32
  }
  func.func @transform_8(%arg0: i32) -> (i32, i32) {
    %c0_i32 = arith.constant 0 : i32
    %c0_i32_0 = arith.constant 0 : i32
    %c0_i32_1 = arith.constant 0 : i32
    return %c0_i32, %c0_i32_0 : i32, i32
  }
  func.func @transform_9(%arg0: i32) -> (i32, i32) {
    %c0_i32 = arith.constant 0 : i32
    %c0_i32_0 = arith.constant 0 : i32
    %c0_i32_1 = arith.constant 0 : i32
    return %c0_i32, %c0_i32_0 : i32, i32
  }
  func.func @transform_10(%arg0: i32) -> (i32, i32) {
    %c0_i32 = arith.constant 0 : i32
    %c0_i32_0 = arith.constant 0 : i32
    %c0_i32_1 = arith.constant 0 : i32
    return %c0_i32, %c0_i32_0 : i32, i32
  }
  func.func @transform_11(%arg0: i32) -> (i32, i32) {
    %c0_i32 = arith.constant 0 : i32
    %c0_i32_0 = arith.constant 0 : i32
    return %arg0, %c0_i32 : i32, i32
  }
}

</mosaic_0001>

<llo_original>
// kernel: tpu_custom_call.1
$region0: #{tpu_custom_call.1}
  #allocation0 [shape = 'u32[]', space=smem, size = 0x4, offset = 0x4, fixed_abs, tag = 'smem constant byte address 0x4 - core index']
  #allocation1 [shape = 'u32[144,128]{1,0:T(1,128)}', space=vmem, size = 0x12000, scoped, tag = 'internal scratch']
  %s0 = inlined_call_operand.hbm [shape: f32[16,64], index: 0, kind: input, shape index: {}]
  %s1 = inlined_call_operand.hbm [shape: bf16[64,128], index: 1, kind: input, shape index: {}]
  %s2 = inlined_call_operand.vmem [shape: f32[1,128], index: 2, kind: input, shape index: {}]
  %s3 = inlined_call_operand.hbm [shape: bf16[128,128], index: 3, kind: input, shape index: {}]
  %s4 = inlined_call_operand.vmem [shape: f32[1,128], index: 4, kind: input, shape index: {}]
  %s5 = inlined_call_operand.hbm [shape: bf16[128,256], index: 5, kind: input, shape index: {}]
  %s6 = inlined_call_operand.vmem [shape: f32[1,256], index: 6, kind: input, shape index: {}]
  %s7 = inlined_call_operand.hbm [shape: bf16[128,256], index: 7, kind: input, shape index: {}]
  %s8 = inlined_call_operand.vmem [shape: f32[1,256], index: 8, kind: input, shape index: {}]
  %s9 = inlined_call_operand.hbm [shape: bf16[256,128], index: 9, kind: input, shape index: {}]
  %s10 = inlined_call_operand.vmem [shape: f32[1,128], index: 10, kind: input, shape index: {}]
  %s11 = inlined_call_operand.hbm [shape: f32[16,128], index: 11, kind: output, shape index: {}]
  %s12 = sld [smem:[#allocation0]]
  $region101: #{tpu_custom_call.1} parent=0
    _
  %s14 = ssub.s32 1, %s12
  %s15 = scalar_select 0, %s14, %s12
  $region1: #{tpu_custom_call.1} parent=0
    #allocation2 [shape = 'u8[8192]{0}', space=vmem, size = 0x2000, scoped, tag = 'input window, operand 0']
    #allocation3 [shape = 's32[2]{0}', space=sflag, size = 0x8, scoped, tag = 'scoped memory for tpu_custom_call.1']
    #allocation4 [shape = 's32[2]{0}', space=sflag, size = 0x8, scoped, tag = 'scoped memory for tpu_custom_call.1']
    #allocation5 [shape = 'u8[16384]{0}', space=vmem, size = 0x4000, scoped, tag = 'input window, operand 1, single buffered']
    #allocation6 [shape = 's32[1]{0}', space=sflag, size = 0x4, scoped, tag = 'scoped memory for tpu_custom_call.1']
    #allocation7 [shape = 'u8[32768]{0}', space=vmem, size = 0x8000, scoped, tag = 'input window, operand 3, single buffered']
    #allocation8 [shape = 'u8[65536]{0}', space=vmem, size = 0x10000, scoped, tag = 'input window, operand 5, single buffered']
    #allocation9 [shape = 's32[1]{0}', space=sflag, size = 0x4, scoped, tag = 'scoped memory for tpu_custom_call.1']
    #allocation10 [shape = 'u8[65536]{0}', space=vmem, size = 0x10000, scoped, tag = 'input window, operand 7, single buffered']
    #allocation11 [shape = 'u8[65536]{0}', space=vmem, size = 0x10000, scoped, tag = 'input window, operand 9, single buffered']
    #allocation12 [shape = 's32[1]{0}', space=sflag, size = 0x4, scoped, tag = 'scoped memory for tpu_custom_call.1']
    #allocation13 [shape = 'u8[8192]{0}', space=vmem, size = 0x2000, scoped, tag = 'output window, operand 0']
    %16 = vsyncpa [#allocation3], 0
    %s17 = scalar_lea.sflag [#allocation3], 1
    %18 = vsyncpa %s17, 0
    %19 = vsyncpa [#allocation6], 0
    %20 = vsyncpa [#allocation9], 0
    %21 = vsyncpa [#allocation12], 0
    %22 = vsyncpa [#allocation4], 0
    %s23 = scalar_lea.sflag [#allocation4], 1
    %24 = vsyncpa %s23, 0
    loop: start=0, step=1, limit=4
    $region2: #{tpu_custom_call.1} parent=1 // loop_pre_header
      _
    $region3: #{tpu_custom_call.1} parent=1 // loop_header
      %s26 = sphi 0, %s30
      %p27 = scmp.ge.s32.totalorder %s26, 4
      %s36 = sphi 0, %s38
      %s39 = sphi 0, %s36
      %s40 = sphi 0, %s39
      %s56 = sphi 0, %s40
      %s60 = sphi 0, %s60
      %s62 = sphi 0, %s60
      %s63 = sphi 0, %s62
      %s77 = sphi 0, %s63
      %s81 = sphi 0, %s81
      %s83 = sphi 0, %s81
      %s84 = sphi 0, %s83
      %s98 = sphi 0, %s84
      %s102 = sphi 0, %s102
      %s104 = sphi 0, %s102
      %s105 = sphi 0, %s104
      %s119 = sphi 0, %s105
      %s123 = sphi 0, %s123
      %s125 = sphi 0, %s123
      %s126 = sphi 0, %s125
      %s140 = sphi 0, %s126
      %s144 = sphi 0, %s144
      %s146 = sphi 0, %s144
      %s147 = sphi 0, %s146
      %s161 = sphi 0, %s147
      %s165 = sphi 0, %s165
      %s167 = sphi 0, %s165
      %s168 = sphi 0, %s167
      %s182 = sphi 0, %s168
      %s186 = sphi 0, %s186
      %s188 = sphi 0, %s186
      %s189 = sphi 0, %s188
      %s203 = sphi 0, %s189
      %s207 = sphi 0, %s207
      %s209 = sphi 0, %s207
      %s210 = sphi 0, %s209
      %s224 = sphi 0, %s210
      %s228 = sphi 0, %s228
      %s230 = sphi 0, %s228
      %s231 = sphi 0, %s230
      %s245 = sphi 0, %s231
      %s249 = sphi 0, %s249
      %s251 = sphi 0, %s249
      %s252 = sphi 0, %s251
      %s266 = sphi 0, %s252
      %s272 = sphi 0, %s274
      %s275 = sphi 0, %s272
      %s276 = sphi 0, %s275
      %s292 = sphi 0, %s276
    $region4: #{tpu_custom_call.1} parent=1 // loop_header_branch
      %29 = sbr.rel (%p27) target = $region8
    $region5: #{tpu_custom_call.1} parent=1 // loop_body
      %s31 = ssub.s32 %s26, 1
      %s32 = ssub.s32 %s26, 2
      %s33 = sadd.s32 %s26, 1
      %s34 = ssub.s32 %s26, %s33
      %p35 = scmp.eq.s32.totalorder %s34, 0
      %s37 = sadd.s32 %s36, 1
      %s38 = scalar_select %p35, %s36, %s37
      %p41 = pneg %p35
      %p42 = scmp.eq.s32.totalorder %s26, 1
      %p43 = por %p41, %p42
      %p44 = scmp.ne.s32.totalorder %s36, %s39
      %p45 = scmp.eq.s32.totalorder %s26, 0
      %p46 = por %p44, %p45
      %p47 = scmp.ne.s32.totalorder %s36, %s39
      %p48 = scmp.eq.s32.totalorder %s31, 1
      %p49 = por %p47, %p48
      %p50 = scmp.ne.s32.totalorder %s39, %s40
      %p51 = scmp.eq.s32.totalorder %s31, 0
      %p52 = por %p50, %p51
      %p53 = scmp.ne.s32.totalorder %s39, %s40
      %p54 = scmp.eq.s32.totalorder %s32, 1
      %p55 = por %p53, %p54
      %p57 = scmp.ne.s32.totalorder %s40, %s56
      %p58 = scmp.eq.s32.totalorder %s32, 0
      %p59 = por %p57, %p58
      %s61 = sadd.s32 %s60, 1
      %p64 = scmp.eq.s32.totalorder %s26, 1
      %p65 = scmp.ne.s32.totalorder %s60, %s62
      %p66 = scmp.eq.s32.totalorder %s26, 0
      %p67 = por %p65, %p66
      %p68 = scmp.ne.s32.totalorder %s60, %s62
      %p69 = scmp.eq.s32.totalorder %s31, 1
      %p70 = por %p68, %p69
      %p71 = scmp.ne.s32.totalorder %s62, %s63
      %p72 = scmp.eq.s32.totalorder %s31, 0
      %p73 = por %p71, %p72
      %p74 = scmp.ne.s32.totalorder %s62, %s63
      %p75 = scmp.eq.s32.totalorder %s32, 1
      %p76 = por %p74, %p75
      %p78 = scmp.ne.s32.totalorder %s63, %s77
      %p79 = scmp.eq.s32.totalorder %s32, 0
      %p80 = por %p78, %p79
      %s82 = sadd.s32 %s81, 1
      %p85 = scmp.eq.s32.totalorder %s26, 1
      %p86 = scmp.ne.s32.totalorder %s81, %s83
      %p87 = scmp.eq.s32.totalorder %s26, 0
      %p88 = por %p86, %p87
      %p89 = scmp.ne.s32.totalorder %s81, %s83
      %p90 = scmp.eq.s32.totalorder %s31, 1
      %p91 = por %p89, %p90
      %p92 = scmp.ne.s32.totalorder %s83, %s84
      %p93 = scmp.eq.s32.totalorder %s31, 0
      %p94 = por %p92, %p93
      %p95 = scmp.ne.s32.totalorder %s83, %s84
      %p96 = scmp.eq.s32.totalorder %s32, 1
      %p97 = por %p95, %p96
      %p99 = scmp.ne.s32.totalorder %s84, %s98
      %p100 = scmp.eq.s32.totalorder %s32, 0
      %p101 = por %p99, %p100
      %s103 = sadd.s32 %s102, 1
      %p106 = scmp.eq.s32.totalorder %s26, 1
      %p107 = scmp.ne.s32.totalorder %s102, %s104
      %p108 = scmp.eq.s32.totalorder %s26, 0
      %p109 = por %p107, %p108
      %p110 = scmp.ne.s32.totalorder %s102, %s104
      %p111 = scmp.eq.s32.totalorder %s31, 1
      %p112 = por %p110, %p111
      %p113 = scmp.ne.s32.totalorder %s104, %s105
      %p114 = scmp.eq.s32.totalorder %s31, 0
      %p115 = por %p113, %p114
      %p116 = scmp.ne.s32.totalorder %s104, %s105
      %p117 = scmp.eq.s32.totalorder %s32, 1
      %p118 = por %p116, %p117
      %p120 = scmp.ne.s32.totalorder %s105, %s119
      %p121 = scmp.eq.s32.totalorder %s32, 0
      %p122 = por %p120, %p121
      %s124 = sadd.s32 %s123, 1
      %p127 = scmp.eq.s32.totalorder %s26, 1
      %p128 = scmp.ne.s32.totalorder %s123, %s125
      %p129 = scmp.eq.s32.totalorder %s26, 0
      %p130 = por %p128, %p129
      %p131 = scmp.ne.s32.totalorder %s123, %s125
      %p132 = scmp.eq.s32.totalorder %s31, 1
      %p133 = por %p131, %p132
      %p134 = scmp.ne.s32.totalorder %s125, %s126
      %p135 = scmp.eq.s32.totalorder %s31, 0
      %p136 = por %p134, %p135
      %p137 = scmp.ne.s32.totalorder %s125, %s126
      %p138 = scmp.eq.s32.totalorder %s32, 1
      %p139 = por %p137, %p138
      %p141 = scmp.ne.s32.totalorder %s126, %s140
      %p142 = scmp.eq.s32.totalorder %s32, 0
      %p143 = por %p141, %p142
      %s145 = sadd.s32 %s144, 1
      %p148 = scmp.eq.s32.totalorder %s26, 1
      %p149 = scmp.ne.s32.totalorder %s144, %s146
      %p150 = scmp.eq.s32.totalorder %s26, 0
      %p151 = por %p149, %p150
      %p152 = scmp.ne.s32.totalorder %s144, %s146
      %p153 = scmp.eq.s32.totalorder %s31, 1
      %p154 = por %p152, %p153
      %p155 = scmp.ne.s32.totalorder %s146, %s147
      %p156 = scmp.eq.s32.totalorder %s31, 0
      %p157 = por %p155, %p156
      %p158 = scmp.ne.s32.totalorder %s146, %s147
      %p159 = scmp.eq.s32.totalorder %s32, 1
      %p160 = por %p158, %p159
      %p162 = scmp.ne.s32.totalorder %s147, %s161
      %p163 = scmp.eq.s32.totalorder %s32, 0
      %p164 = por %p162, %p163
      %s166 = sadd.s32 %s165, 1
      %p169 = scmp.eq.s32.totalorder %s26, 1
      %p170 = scmp.ne.s32.totalorder %s165, %s167
      %p171 = scmp.eq.s32.totalorder %s26, 0
      %p172 = por %p170, %p171
      %p173 = scmp.ne.s32.totalorder %s165, %s167
      %p174 = scmp.eq.s32.totalorder %s31, 1
      %p175 = por %p173, %p174
      %p176 = scmp.ne.s32.totalorder %s167, %s168
      %p177 = scmp.eq.s32.totalorder %s31, 0
      %p178 = por %p176, %p177
      %p179 = scmp.ne.s32.totalorder %s167, %s168
      %p180 = scmp.eq.s32.totalorder %s32, 1
      %p181 = por %p179, %p180
      %p183 = scmp.ne.s32.totalorder %s168, %s182
      %p184 = scmp.eq.s32.totalorder %s32, 0
      %p185 = por %p183, %p184
      %s187 = sadd.s32 %s186, 1
      %p190 = scmp.eq.s32.totalorder %s26, 1
      %p191 = scmp.ne.s32.totalorder %s186, %s188
      %p192 = scmp.eq.s32.totalorder %s26, 0
      %p193 = por %p191, %p192
      %p194 = scmp.ne.s32.totalorder %s186, %s188
      %p195 = scmp.eq.s32.totalorder %s31, 1
      %p196 = por %p194, %p195
      %p197 = scmp.ne.s32.totalorder %s188, %s189
      %p198 = scmp.eq.s32.totalorder %s31, 0
      %p199 = por %p197, %p198
      %p200 = scmp.ne.s32.totalorder %s188, %s189
      %p201 = scmp.eq.s32.totalorder %s32, 1
      %p202 = por %p200, %p201
      %p204 = scmp.ne.s32.totalorder %s189, %s203
      %p205 = scmp.eq.s32.totalorder %s32, 0
      %p206 = por %p204, %p205
      %s208 = sadd.s32 %s207, 1
      %p211 = scmp.eq.s32.totalorder %s26, 1
      %p212 = scmp.ne.s32.totalorder %s207, %s209
      %p213 = scmp.eq.s32.totalorder %s26, 0
      %p214 = por %p212, %p213
      %p215 = scmp.ne.s32.totalorder %s207, %s209
      %p216 = scmp.eq.s32.totalorder %s31, 1
      %p217 = por %p215, %p216
      %p218 = scmp.ne.s32.totalorder %s209, %s210
      %p219 = scmp.eq.s32.totalorder %s31, 0
      %p220 = por %p218, %p219
      %p221 = scmp.ne.s32.totalorder %s209, %s210
      %p222 = scmp.eq.s32.totalorder %s32, 1
      %p223 = por %p221, %p222
      %p225 = scmp.ne.s32.totalorder %s210, %s224
      %p226 = scmp.eq.s32.totalorder %s32, 0
      %p227 = por %p225, %p226
      %s229 = sadd.s32 %s228, 1
      %p232 = scmp.eq.s32.totalorder %s26, 1
      %p233 = scmp.ne.s32.totalorder %s228, %s230
      %p234 = scmp.eq.s32.totalorder %s26, 0
      %p235 = por %p233, %p234
      %p236 = scmp.ne.s32.totalorder %s228, %s230
      %p237 = scmp.eq.s32.totalorder %s31, 1
      %p238 = por %p236, %p237
      %p239 = scmp.ne.s32.totalorder %s230, %s231
      %p240 = scmp.eq.s32.totalorder %s31, 0
      %p241 = por %p239, %p240
      %p242 = scmp.ne.s32.totalorder %s230, %s231
      %p243 = scmp.eq.s32.totalorder %s32, 1
      %p244 = por %p242, %p243
      %p246 = scmp.ne.s32.totalorder %s231, %s245
      %p247 = scmp.eq.s32.totalorder %s32, 0
      %p248 = por %p246, %p247
      %s250 = sadd.s32 %s249, 1
      %p253 = scmp.eq.s32.totalorder %s26, 1
      %p254 = scmp.ne.s32.totalorder %s249, %s251
      %p255 = scmp.eq.s32.totalorder %s26, 0
      %p256 = por %p254, %p255
      %p257 = scmp.ne.s32.totalorder %s249, %s251
      %p258 = scmp.eq.s32.totalorder %s31, 1
      %p259 = por %p257, %p258
      %p260 = scmp.ne.s32.totalorder %s251, %s252
      %p261 = scmp.eq.s32.totalorder %s31, 0
      %p262 = por %p260, %p261
      %p263 = scmp.ne.s32.totalorder %s251, %s252
      %p264 = scmp.eq.s32.totalorder %s32, 1
      %p265 = por %p263, %p264
      %p267 = scmp.ne.s32.totalorder %s252, %s266
      %p268 = scmp.eq.s32.totalorder %s32, 0
      %p269 = por %p267, %p268
      %s270 = ssub.s32 %s26, %s33
      %p271 = scmp.eq.s32.totalorder %s270, 0
      %s273 = sadd.s32 %s272, 1
      %s274 = scalar_select %p271, %s272, %s273
      %p277 = pneg %p271
      %p278 = scmp.eq.s32.totalorder %s26, 1
      %p279 = por %p277, %p278
      %p280 = scmp.ne.s32.totalorder %s272, %s275
      %p281 = scmp.eq.s32.totalorder %s26, 0
      %p282 = por %p280, %p281
      %p283 = scmp.ne.s32.totalorder %s272, %s275
      %p284 = scmp.eq.s32.totalorder %s31, 1
      %p285 = por %p283, %p284
      %p286 = scmp.ne.s32.totalorder %s275, %s276
      %p287 = scmp.eq.s32.totalorder %s31, 0
      %p288 = por %p286, %p287
      %p289 = scmp.ne.s32.totalorder %s275, %s276
      %p290 = scmp.eq.s32.totalorder %s32, 1
      %p291 = por %p289, %p290
      %p293 = scmp.ne.s32.totalorder %s276, %s292
      %p294 = scmp.eq.s32.totalorder %s32, 0
      %p295 = por %p293, %p294
      %p296 = scmp.le.s32.totalorder 1, %s26
      %p297 = scmp.lt.s32.totalorder %s26, 3
      %p298 = pnand %p296, %p297
      %p299 = pneg %p298
      // Predicated region
      $region9: #{tpu_custom_call.1} parent=5 // pred_check
        _
      $region10: #{tpu_custom_call.1} parent=5 // pred_check_branch
        %301 = sbr.rel (%p298) target = $region12
      $region11: #{tpu_custom_call.1} parent=5 // pred_region
        %s302 = ssub.s32 %s26, 1
        // Predicated region
        $region13: #{tpu_custom_call.1} parent=11 // pred_check
          %p303 = pneg %p73
        $region14: #{tpu_custom_call.1} parent=11 // pred_check_branch
          %305 = sbr.rel (%p303) target = $region16
        $region15: #{tpu_custom_call.1} parent=11 // pred_region
          %s307 = ssub.s32 512, 512
          %308 = vsyncadd [#allocation6], %s307
          %s309 = sshll.u32 [#allocation5], 4
          %s310 = int_to_ptr.vmem [resolvable:$true] %s309
          %315 = dma.hbm_to_vmem [thread:$0]  %s1, 512, %s310, [#allocation6], 64, 64, 4
        $region16: #{tpu_custom_call.1} parent=11 // pred_fallthru
          _
        // Predicated region
        $region17: #{tpu_custom_call.1} parent=11 // pred_check
          %p316 = pneg %p94
        $region18: #{tpu_custom_call.1} parent=11 // pred_check_branch
          %318 = sbr.rel (%p316) target = $region20
        $region19: #{tpu_custom_call.1} parent=11 // pred_region
          _
        $region20: #{tpu_custom_call.1} parent=11 // pred_fallthru
          _
        // Predicated region
        $region21: #{tpu_custom_call.1} parent=11 // pred_check
          %p319 = pneg %p115
        $region22: #{tpu_custom_call.1} parent=11 // pred_check_branch
          %321 = sbr.rel (%p319) target = $region24
        $region23: #{tpu_custom_call.1} parent=11 // pred_region
          %s323 = ssub.s32 1024, 1024
          %324 = vsyncadd [#allocation6], %s323
          %s325 = sshll.u32 [#allocation7], 4
          %s326 = int_to_ptr.vmem [resolvable:$true] %s325
          %331 = dma.hbm_to_vmem [thread:$0]  %s3, 1024, %s326, [#allocation6], 64, 64, 4
        $region24: #{tpu_custom_call.1} parent=11 // pred_fallthru
          _
        // Predicated region
        $region25: #{tpu_custom_call.1} parent=11 // pred_check
          %p332 = pneg %p136
        $region26: #{tpu_custom_call.1} parent=11 // pred_check_branch
          %334 = sbr.rel (%p332) target = $region28
        $region27: #{tpu_custom_call.1} parent=11 // pred_region
          _
        $region28: #{tpu_custom_call.1} parent=11 // pred_fallthru
          _
        // Predicated region
        $region29: #{tpu_custom_call.1} parent=11 // pred_check
          %p335 = pneg %p157
        $region30: #{tpu_custom_call.1} parent=11 // pred_check_branch
          %337 = sbr.rel (%p335) target = $region32
        $region31: #{tpu_custom_call.1} parent=11 // pred_region
          %s339 = ssub.s32 2048, 2048
          %340 = vsyncadd [#allocation9], %s339
          %s341 = sshll.u32 [#allocation8], 4
          %s342 = int_to_ptr.vmem [resolvable:$true] %s341
          %347 = dma.hbm_to_vmem [thread:$0]  %s5, 2048, %s342, [#allocation9], 128, 128, 8
        $region32: #{tpu_custom_call.1} parent=11 // pred_fallthru
          _
        // Predicated region
        $region33: #{tpu_custom_call.1} parent=11 // pred_check
          %p348 = pneg %p178
        $region34: #{tpu_custom_call.1} parent=11 // pred_check_branch
          %350 = sbr.rel (%p348) target = $region36
        $region35: #{tpu_custom_call.1} parent=11 // pred_region
          _
        $region36: #{tpu_custom_call.1} parent=11 // pred_fallthru
          _
        // Predicated region
        $region37: #{tpu_custom_call.1} parent=11 // pred_check
          %p351 = pneg %p199
        $region38: #{tpu_custom_call.1} parent=11 // pred_check_branch
          %353 = sbr.rel (%p351) target = $region40
        $region39: #{tpu_custom_call.1} parent=11 // pred_region
          %s355 = ssub.s32 2048, 2048
          %356 = vsyncadd [#allocation9], %s355
          %s357 = sshll.u32 [#allocation10], 4
          %s358 = int_to_ptr.vmem [resolvable:$true] %s357
          %363 = dma.hbm_to_vmem [thread:$0]  %s7, 2048, %s358, [#allocation9], 128, 128, 8
        $region40: #{tpu_custom_call.1} parent=11 // pred_fallthru
          _
        // Predicated region
        $region41: #{tpu_custom_call.1} parent=11 // pred_check
          %p364 = pneg %p220
        $region42: #{tpu_custom_call.1} parent=11 // pred_check_branch
          %366 = sbr.rel (%p364) target = $region44
        $region43: #{tpu_custom_call.1} parent=11 // pred_region
          _
        $region44: #{tpu_custom_call.1} parent=11 // pred_fallthru
          _
        // Predicated region
        $region45: #{tpu_custom_call.1} parent=11 // pred_check
          %p367 = pneg %p241
        $region46: #{tpu_custom_call.1} parent=11 // pred_check_branch
          %369 = sbr.rel (%p367) target = $region48
        $region47: #{tpu_custom_call.1} parent=11 // pred_region
          %s371 = ssub.s32 2048, 2048
          %372 = vsyncadd [#allocation12], %s371
          %s373 = sshll.u32 [#allocation11], 4
          %s374 = int_to_ptr.vmem [resolvable:$true] %s373
          %379 = dma.hbm_to_vmem [thread:$0]  %s9, 2048, %s374, [#allocation12], 64, 64, 4
        $region48: #{tpu_custom_call.1} parent=11 // pred_fallthru
          _
        // Predicated region
        $region49: #{tpu_custom_call.1} parent=11 // pred_check
          %p380 = pneg %p262
        $region50: #{tpu_custom_call.1} parent=11 // pred_check_branch
          %382 = sbr.rel (%p380) target = $region52
        $region51: #{tpu_custom_call.1} parent=11 // pred_region
          _
        $region52: #{tpu_custom_call.1} parent=11 // pred_fallthru
          _
      $region12: #{tpu_custom_call.1} parent=5 // pred_fallthru
        _
      %p383 = scmp.lt.s32.totalorder %s26, 2
      // Predicated region
      $region53: #{tpu_custom_call.1} parent=5 // pred_check
        %p384 = pneg %p383
      $region54: #{tpu_custom_call.1} parent=5 // pred_check_branch
        %386 = sbr.rel (%p384) target = $region56
      $region55: #{tpu_custom_call.1} parent=5 // pred_region
        // Predicated region
        $region57: #{tpu_custom_call.1} parent=55 // pred_check
          %p387 = pneg %p46
        $region58: #{tpu_custom_call.1} parent=55 // pred_check_branch
          %389 = sbr.rel (%p387) target = $region60
        $region59: #{tpu_custom_call.1} parent=55 // pred_region
          %s390 = sand.u32 %s36, 1
          %s391 = scalar_lea.sflag [#allocation3], %s390
          %s392 = sand.u32 %s36, 1
          %s393 = smul.addr %s392, 8
          %s394 = scalar_lea.vmem [#allocation2], %s393
          %s396 = ssub.s32 128, 128
          %397 = vsyncadd %s391, %s396
          %s398 = smul.addr %s26, 128
          %s399 = scalar_lea.hbm %s0, %s398
          %s401 = sshll.u32 %s394, 4
          %s402 = int_to_ptr.vmem [resolvable:$true] %s401
          %404 = dma.hbm_to_vmem [thread:$0]  %s399, 128, %s402, %s391
        $region60: #{tpu_custom_call.1} parent=55 // pred_fallthru
          _
      $region56: #{tpu_custom_call.1} parent=5 // pred_fallthru
        _
      %p405 = scmp.le.s32.totalorder 1, %s26
      %p406 = scmp.lt.s32.totalorder %s26, 3
      %p407 = pnand %p405, %p406
      %p408 = pneg %p407
      // Predicated region
      $region61: #{tpu_custom_call.1} parent=5 // pred_check
        _
      $region62: #{tpu_custom_call.1} parent=5 // pred_check_branch
        %410 = sbr.rel (%p407) target = $region64
      $region63: #{tpu_custom_call.1} parent=5 // pred_region
        %s411 = ssub.s32 %s26, 1
        %s412 = sand.u32 %s39, 1
        %s413 = scalar_lea.sflag [#allocation3], %s412
        %s414 = sand.u32 %s39, 1
        %s415 = smul.addr %s414, 8
        %s416 = scalar_lea.vmem [#allocation2], %s415
        // Predicated region
        $region65: #{tpu_custom_call.1} parent=63 // pred_check
          %p417 = pneg %p52
        $region66: #{tpu_custom_call.1} parent=63 // pred_check_branch
          %419 = sbr.rel (%p417) target = $region68
        $region67: #{tpu_custom_call.1} parent=63 // pred_region
          %420 = dma.done %s413, 128
        $region68: #{tpu_custom_call.1} parent=63 // pred_fallthru
          _
        // Predicated region
        $region69: #{tpu_custom_call.1} parent=63 // pred_check
          %p421 = pneg %p73
        $region70: #{tpu_custom_call.1} parent=63 // pred_check_branch
          %423 = sbr.rel (%p421) target = $region72
        $region71: #{tpu_custom_call.1} parent=63 // pred_region
          %424 = dma.done [#allocation6], 512
        $region72: #{tpu_custom_call.1} parent=63 // pred_fallthru
          _
        // Predicated region
        $region73: #{tpu_custom_call.1} parent=63 // pred_check
          %p425 = pneg %p115
        $region74: #{tpu_custom_call.1} parent=63 // pred_check_branch
          %427 = sbr.rel (%p425) target = $region76
        $region75: #{tpu_custom_call.1} parent=63 // pred_region
          %428 = dma.done [#allocation6], 1024
        $region76: #{tpu_custom_call.1} parent=63 // pred_fallthru
          _
        // Predicated region
        $region77: #{tpu_custom_call.1} parent=63 // pred_check
          %p429 = pneg %p157
        $region78: #{tpu_custom_call.1} parent=63 // pred_check_branch
          %431 = sbr.rel (%p429) target = $region80
        $region79: #{tpu_custom_call.1} parent=63 // pred_region
          %432 = dma.done [#allocation9], 2048
        $region80: #{tpu_custom_call.1} parent=63 // pred_fallthru
          _
        // Predicated region
        $region81: #{tpu_custom_call.1} parent=63 // pred_check
          %p433 = pneg %p199
        $region82: #{tpu_custom_call.1} parent=63 // pred_check_branch
          %435 = sbr.rel (%p433) target = $region84
        $region83: #{tpu_custom_call.1} parent=63 // pred_region
          %436 = dma.done [#allocation9], 2048
        $region84: #{tpu_custom_call.1} parent=63 // pred_fallthru
          _
        // Predicated region
        $region85: #{tpu_custom_call.1} parent=63 // pred_check
          %p437 = pneg %p241
        $region86: #{tpu_custom_call.1} parent=63 // pred_check_branch
          %439 = sbr.rel (%p437) target = $region88
        $region87: #{tpu_custom_call.1} parent=63 // pred_region
          %440 = dma.done [#allocation12], 2048
        $region88: #{tpu_custom_call.1} parent=63 // pred_fallthru
          _
        %s441 = sand.u32 %s39, 1
        %s442 = scalar_lea.sflag [#allocation3], %s441
        %s443 = sand.u32 %s39, 1
        %s444 = smul.addr %s443, 8
        %s445 = scalar_lea.vmem [#allocation2], %s444
        %p446 = pneg %p52
        %p447 = pneg %p49
        %p448 = pneg %p73
        %p449 = pneg %p70
        %p450 = pneg %p94
        %p451 = pneg %p91
        %p452 = pneg %p115
        %p453 = pneg %p112
        %p454 = pneg %p136
        %p455 = pneg %p133
        %p456 = pneg %p157
        %p457 = pneg %p154
        %p458 = pneg %p178
        %p459 = pneg %p175
        %p460 = pneg %p199
        %p461 = pneg %p196
        %p462 = pneg %p220
        %p463 = pneg %p217
        %p464 = pneg %p241
        %p465 = pneg %p238
        %p466 = pneg %p262
        %p467 = pneg %p259
        %p468 = pneg %p288
        %p469 = pneg %p285
        %s470 = sand.u32 %s275, 1
        %s471 = scalar_lea.sflag [#allocation4], %s470
        %s472 = sand.u32 %s275, 1
        %s473 = smul.addr %s472, 8
        %s474 = scalar_lea.vmem [#allocation13], %s473
        %v476 = vld [vmem:[%s416] sm:$0xff]
        %v477 = vpack.c.bf16 %v476, %v476
        %v478 = vld [vmem:[#allocation5] sm:$0xf]
        %v479 = vld [vmem:[#allocation5 + $0x4] sm:$0xf]
        %v480 = vld [vmem:[#allocation5 + $0x8] sm:$0xf]
        %v481 = vld [vmem:[#allocation5 + $0xc] sm:$0xf]
        %v482 = vld [vmem:[#allocation5 + $0x10] sm:$0xf]
        %v483 = vld [vmem:[#allocation5 + $0x14] sm:$0xf]
        %v484 = vld [vmem:[#allocation5 + $0x18] sm:$0xf]
        %v485 = vld [vmem:[#allocation5 + $0x1c] sm:$0xf]
        %v486 = vld [vmem:[%s2] sm:$0x1]
        %v488 = vlaneseq
        %v489 = vshrl.u32 %v488, 7
        %v490 = vsub.s32 0, %v489
        %v491 = vrot.slane %v486, %v490
        %v501 = vunpack.c.l.b16 %v478
        %v502 = vunpack.c.l.b16 %v479
        %v503 = vunpack.c.l.b16 %v480
        %v504 = vunpack.c.l.b16 %v481
        %v505 = vunpack.c.l.b16 %v482
        %v506 = vunpack.c.l.b16 %v483
        %v507 = vunpack.c.l.b16 %v484
        %v508 = vunpack.c.l.b16 %v485
        %v509 = vpack.c.b16 %v502, %v501
        %v510 = vpack.c.b16 %v504, %v503
        %v511 = vpack.c.b16 %v506, %v505
        %v512 = vpack.c.b16 %v508, %v507
        %vm517 = vcmask 523264
        %v519 = vsel %vm517, %v477, 0
        %521 = vmatprep.subr.bf16.mxu0 0
        %522 = vmatpush1.bf16.msra.mxu0 %v509
        %523 = vmatprep.subr.bf16.mxu0 0
        %524 = vmatpush1.bf16.msra.mxu0 %v510
        %525 = vmatprep.subr.bf16.mxu0 0
        %526 = vmatpush1.bf16.msra.mxu0 %v511
        %527 = vmatprep.subr.bf16.mxu0 0
        %528 = vmatpush1.bf16.msra.mxu0 %v512
        %529 = vmatprep.subr.bf16.mxu0 0
        %530 = vmatpush1.bf16.msra.mxu0 0
        %531 = vmatprep.subr.bf16.mxu0 0
        %532 = vmatpush1.bf16.msra.mxu0 0
        %533 = vmatprep.subr.bf16.mxu0 0
        %534 = vmatpush1.bf16.msra.mxu0 0
        %535 = vmatprep.subr.bf16.mxu0 0
        %536 = vmatpush1.bf16.msra.mxu0 0
        %537 = vmatprep.subr.bf16.mxu0 0
        %538 = vmatpush1.bf16.msra.mxu0 0
        %539 = vmatprep.subr.bf16.mxu0 0
        %540 = vmatpush1.bf16.msra.mxu0 0
        %541 = vmatprep.subr.bf16.mxu0 0
        %542 = vmatpush1.bf16.msra.mxu0 0
        %543 = vmatprep.subr.bf16.mxu0 0
        %544 = vmatpush1.bf16.msra.mxu0 0
        %545 = vmatprep.subr.bf16.mxu0 0
        %546 = vmatpush1.bf16.msra.mxu0 0
        %547 = vmatprep.subr.bf16.mxu0 0
        %548 = vmatpush1.bf16.msra.mxu0 0
        %549 = vmatprep.subr.bf16.mxu0 0
        %550 = vmatpush1.bf16.msra.mxu0 0
        %551 = vmatprep.subr.bf16.mxu0 0
        %552 = vmatpush1.bf16.msra.mxu0 0
        %553 = vmatprep.mubr.bf16.mxu0 0
        %554 = vmatmul.mubr.bf16.gmra.mrb[0].mxu0 %v519
        %v555 = vpop.f32.mrb[0].mxu0
        %v556 = vadd.f32 %v491, %v555
        %v557 = vpop.f32.mrb[0].mxu0
        %v558 = vpop.f32.mrb[0].mxu0
        %v559 = vpop.f32.mrb[0].mxu0
        %560 = vdwg.mxu0
        %v561 = vpack.c.bf16 %v556, %v556
        %v562 = vld [vmem:[#allocation7] sm:$0xf]
        %v563 = vld [vmem:[#allocation7 + $0x4] sm:$0xf]
        %v564 = vld [vmem:[#allocation7 + $0x8] sm:$0xf]
        %v565 = vld [vmem:[#allocation7 + $0xc] sm:$0xf]
        %v566 = vld [vmem:[#allocation7 + $0x10] sm:$0xf]
        %v567 = vld [vmem:[#allocation7 + $0x14] sm:$0xf]
        %v568 = vld [vmem:[#allocation7 + $0x18] sm:$0xf]
        %v569 = vld [vmem:[#allocation7 + $0x1c] sm:$0xf]
        %v570 = vld [vmem:[#allocation7 + $0x20] sm:$0xf]
        %v571 = vld [vmem:[#allocation7 + $0x24] sm:$0xf]
        %v572 = vld [vmem:[#allocation7 + $0x28] sm:$0xf]
        %v573 = vld [vmem:[#allocation7 + $0x2c] sm:$0xf]
        %v574 = vld [vmem:[#allocation7 + $0x30] sm:$0xf]
        %v575 = vld [vmem:[#allocation7 + $0x34] sm:$0xf]
        %v576 = vld [vmem:[#allocation7 + $0x38] sm:$0xf]
        %v577 = vld [vmem:[#allocation7 + $0x3c] sm:$0xf]
        %v578 = vld [vmem:[%s4] sm:$0x1]
        %v580 = vlaneseq
        %v581 = vshrl.u32 %v580, 7
        %v582 = vsub.s32 0, %v581
        %v583 = vrot.slane %v578, %v582
        %v601 = vunpack.c.l.b16 %v562
        %v602 = vunpack.c.l.b16 %v563
        %v603 = vunpack.c.l.b16 %v564
        %v604 = vunpack.c.l.b16 %v565
        %v605 = vunpack.c.l.b16 %v566
        %v606 = vunpack.c.l.b16 %v567
        %v607 = vunpack.c.l.b16 %v568
        %v608 = vunpack.c.l.b16 %v569
        %v609 = vunpack.c.l.b16 %v570
        %v610 = vunpack.c.l.b16 %v571
        %v611 = vunpack.c.l.b16 %v572
        %v612 = vunpack.c.l.b16 %v573
        %v613 = vunpack.c.l.b16 %v574
        %v614 = vunpack.c.l.b16 %v575
        %v615 = vunpack.c.l.b16 %v576
        %v616 = vunpack.c.l.b16 %v577
        %v617 = vpack.c.b16 %v602, %v601
        %v618 = vpack.c.b16 %v604, %v603
        %v619 = vpack.c.b16 %v606, %v605
        %v620 = vpack.c.b16 %v608, %v607
        %v621 = vpack.c.b16 %v610, %v609
        %v622 = vpack.c.b16 %v612, %v611
        %v623 = vpack.c.b16 %v614, %v613
        %v624 = vpack.c.b16 %v616, %v615
        %633 = vmatprep.subr.bf16.mxu0 0
        %634 = vmatpush1.bf16.msra.mxu0 %v617
        %635 = vmatprep.subr.bf16.mxu0 0
        %636 = vmatpush1.bf16.msra.mxu0 %v618
        %637 = vmatprep.subr.bf16.mxu0 0
        %638 = vmatpush1.bf16.msra.mxu0 %v619
        %639 = vmatprep.subr.bf16.mxu0 0
        %640 = vmatpush1.bf16.msra.mxu0 %v620
        %641 = vmatprep.subr.bf16.mxu0 0
        %642 = vmatpush1.bf16.msra.mxu0 %v621
        %643 = vmatprep.subr.bf16.mxu0 0
        %644 = vmatpush1.bf16.msra.mxu0 %v622
        %645 = vmatprep.subr.bf16.mxu0 0
        %646 = vmatpush1.bf16.msra.mxu0 %v623
        %647 = vmatprep.subr.bf16.mxu0 0
        %648 = vmatpush1.bf16.msra.mxu0 %v624
        %649 = vmatprep.subr.bf16.mxu0 0
        %650 = vmatpush1.bf16.msra.mxu0 0
        %651 = vmatprep.subr.bf16.mxu0 0
        %652 = vmatpush1.bf16.msra.mxu0 0
        %653 = vmatprep.subr.bf16.mxu0 0
        %654 = vmatpush1.bf16.msra.mxu0 0
        %655 = vmatprep.subr.bf16.mxu0 0
        %656 = vmatpush1.bf16.msra.mxu0 0
        %657 = vmatprep.subr.bf16.mxu0 0
        %658 = vmatpush1.bf16.msra.mxu0 0
        %659 = vmatprep.subr.bf16.mxu0 0
        %660 = vmatpush1.bf16.msra.mxu0 0
        %661 = vmatprep.subr.bf16.mxu0 0
        %662 = vmatpush1.bf16.msra.mxu0 0
        %663 = vmatprep.subr.bf16.mxu0 0
        %664 = vmatpush1.bf16.msra.mxu0 0
        %665 = vmatprep.mubr.bf16.mxu0 0
        %666 = vmatmul.mubr.bf16.gmra.mrb[0].mxu0 %v561
        %v667 = vpop.f32.mrb[0].mxu0
        %v668 = vadd.f32 %v583, %v667
        %v669 = vpop.f32.mrb[0].mxu0
        %v670 = vpop.f32.mrb[0].mxu0
        %v671 = vpop.f32.mrb[0].mxu0
        %672 = vdwg.mxu0
        %vm673 = vcmp.gt.f32.partialorder %v668, 0.0
        %v674 = vmul.f32 %v668, 0.01
        %v675 = vsel %vm673, %v668, %v674
        %676 = vmax.xlane.f32.xlu0 %v675
        %v677 = vpop.xlane.xlu0 %676
        %v678 = vsub.f32 %v675, %v677
        %v679 = vmul.f32 %v678, 1.442695
        %v680 = vpow.pop %v679
        %681 = vadd.xlane.f32.xlu0 %v680
        %v682 = vpop.xlane.xlu0 %681
        %v683 = vrcp.pop %v682
        %v684 = vmul.f32 %v680, %v683
        %v685 = vmul.f32 %v556, %v684
        %v686 = vpack.c.bf16 %v685, %v685
        %v687 = vld [vmem:[#allocation8] sm:$0xff]
        %v688 = vld [vmem:[#allocation8 + $0x8] sm:$0xff]
        %v689 = vld [vmem:[#allocation8 + $0x10] sm:$0xff]
        %v690 = vld [vmem:[#allocation8 + $0x18] sm:$0xff]
        %v691 = vld [vmem:[#allocation8 + $0x20] sm:$0xff]
        %v692 = vld [vmem:[#allocation8 + $0x28] sm:$0xff]
        %v693 = vld [vmem:[#allocation8 + $0x30] sm:$0xff]
        %v694 = vld [vmem:[#allocation8 + $0x38] sm:$0xff]
        %v695 = vld [vmem:[#allocation8 + $0x40] sm:$0xff]
        %v696 = vld [vmem:[#allocation8 + $0x48] sm:$0xff]
        %v697 = vld [vmem:[#allocation8 + $0x50] sm:$0xff]
        %v698 = vld [vmem:[#allocation8 + $0x58] sm:$0xff]
        %v699 = vld [vmem:[#allocation8 + $0x60] sm:$0xff]
        %v700 = vld [vmem:[#allocation8 + $0x68] sm:$0xff]
        %v701 = vld [vmem:[#allocation8 + $0x70] sm:$0xff]
        %v702 = vld [vmem:[#allocation8 + $0x78] sm:$0xff]
        %v703 = vld [vmem:[%s6] sm:$0x3]
        %v705 = vlaneseq
        %v706 = vshrl.u32 %v705, 7
        %v707 = vsub.s32 0, %v706
        %v708 = vrot.slane %v703, %v707
        %v709 = vlaneseq
        %v710 = vshrl.u32 %v709, 7
        %v711 = vsub.s32 1, %v710
        %v712 = vrot.slane %v703, %v711
        %v731 = vunpack.c.l.b16 %v687
        %v732 = vunpack.c.h.b16 %v687
        %v733 = vunpack.c.l.b16 %v688
        %v734 = vunpack.c.h.b16 %v688
        %v735 = vunpack.c.l.b16 %v689
        %v736 = vunpack.c.h.b16 %v689
        %v737 = vunpack.c.l.b16 %v690
        %v738 = vunpack.c.h.b16 %v690
        %v739 = vunpack.c.l.b16 %v691
        %v740 = vunpack.c.h.b16 %v691
        %v741 = vunpack.c.l.b16 %v692
        %v742 = vunpack.c.h.b16 %v692
        %v743 = vunpack.c.l.b16 %v693
        %v744 = vunpack.c.h.b16 %v693
        %v745 = vunpack.c.l.b16 %v694
        %v746 = vunpack.c.h.b16 %v694
        %v747 = vunpack.c.l.b16 %v695
        %v748 = vunpack.c.h.b16 %v695
        %v749 = vunpack.c.l.b16 %v696
        %v750 = vunpack.c.h.b16 %v696
        %v751 = vunpack.c.l.b16 %v697
        %v752 = vunpack.c.h.b16 %v697
        %v753 = vunpack.c.l.b16 %v698
        %v754 = vunpack.c.h.b16 %v698
        %v755 = vunpack.c.l.b16 %v699
        %v756 = vunpack.c.h.b16 %v699
        %v757 = vunpack.c.l.b16 %v700
        %v758 = vunpack.c.h.b16 %v700
        %v759 = vunpack.c.l.b16 %v701
        %v760 = vunpack.c.h.b16 %v701
        %v761 = vunpack.c.l.b16 %v702
        %v762 = vunpack.c.h.b16 %v702
        %v763 = vpack.c.b16 %v733, %v731
        %v764 = vpack.c.b16 %v734, %v732
        %v765 = vpack.c.b16 %v737, %v735
        %v766 = vpack.c.b16 %v738, %v736
        %v767 = vpack.c.b16 %v741, %v739
        %v768 = vpack.c.b16 %v742, %v740
        %v769 = vpack.c.b16 %v745, %v743
        %v770 = vpack.c.b16 %v746, %v744
        %v771 = vpack.c.b16 %v749, %v747
        %v772 = vpack.c.b16 %v750, %v748
        %v773 = vpack.c.b16 %v753, %v751
        %v774 = vpack.c.b16 %v754, %v752
        %v775 = vpack.c.b16 %v757, %v755
        %v776 = vpack.c.b16 %v758, %v756
        %v777 = vpack.c.b16 %v761, %v759
        %v778 = vpack.c.b16 %v762, %v760
        %795 = vmatprep.subr.bf16.mxu0 %v764
        %796 = vmatpush1.bf16.msra.mxu0 %v763
        %797 = vmatprep.subr.bf16.mxu0 %v766
        %798 = vmatpush1.bf16.msra.mxu0 %v765
        %799 = vmatprep.subr.bf16.mxu0 %v768
        %800 = vmatpush1.bf16.msra.mxu0 %v767
        %801 = vmatprep.subr.bf16.mxu0 %v770
        %802 = vmatpush1.bf16.msra.mxu0 %v769
        %803 = vmatprep.subr.bf16.mxu0 %v772
        %804 = vmatpush1.bf16.msra.mxu0 %v771
        %805 = vmatprep.subr.bf16.mxu0 %v774
        %806 = vmatpush1.bf16.msra.mxu0 %v773
        %807 = vmatprep.subr.bf16.mxu0 %v776
        %808 = vmatpush1.bf16.msra.mxu0 %v775
        %809 = vmatprep.subr.bf16.mxu0 %v778
        %810 = vmatpush1.bf16.msra.mxu0 %v777
        %811 = vmatprep.subr.bf16.mxu0 0
        %812 = vmatpush1.bf16.msra.mxu0 0
        %813 = vmatprep.subr.bf16.mxu0 0
        %814 = vmatpush1.bf16.msra.mxu0 0
        %815 = vmatprep.subr.bf16.mxu0 0
        %816 = vmatpush1.bf16.msra.mxu0 0
        %817 = vmatprep.subr.bf16.mxu0 0
        %818 = vmatpush1.bf16.msra.mxu0 0
        %819 = vmatprep.subr.bf16.mxu0 0
        %820 = vmatpush1.bf16.msra.mxu0 0
        %821 = vmatprep.subr.bf16.mxu0 0
        %822 = vmatpush1.bf16.msra.mxu0 0
        %823 = vmatprep.subr.bf16.mxu0 0
        %824 = vmatpush1.bf16.msra.mxu0 0
        %825 = vmatprep.subr.bf16.mxu0 0
        %826 = vmatpush1.bf16.msra.mxu0 0
        %827 = vmatprep.mubr.bf16.mxu0 0
        %828 = vmatmul.mubr.bf16.gmra.mrb[0].mxu0 %v686
        %v829 = vpop.f32.mrb[0].mxu0
        %v830 = vadd.f32 %v708, %v829
        %v831 = vpop.f32.mrb[0].mxu0
        %v832 = vadd.f32 %v712, %v831
        %v833 = vpop.f32.mrb[0].mxu0
        %v834 = vpop.f32.mrb[0].mxu0
        %835 = vdwg.mxu0
        %vm836 = vcmp.gt.f32.partialorder %v830, 0.0
        %vm837 = vcmp.gt.f32.partialorder %v832, 0.0
        %v838 = vmul.f32 %v830, 0.01
        %v839 = vmul.f32 %v832, 0.01
        %v840 = vsel %vm836, %v830, %v838
        %v841 = vsel %vm837, %v832, %v839
        %v842 = vld [vmem:[#allocation10] sm:$0xff]
        %v843 = vld [vmem:[#allocation10 + $0x8] sm:$0xff]
        %v844 = vld [vmem:[#allocation10 + $0x10] sm:$0xff]
        %v845 = vld [vmem:[#allocation10 + $0x18] sm:$0xff]
        %v846 = vld [vmem:[#allocation10 + $0x20] sm:$0xff]
        %v847 = vld [vmem:[#allocation10 + $0x28] sm:$0xff]
        %v848 = vld [vmem:[#allocation10 + $0x30] sm:$0xff]
        %v849 = vld [vmem:[#allocation10 + $0x38] sm:$0xff]
        %v850 = vld [vmem:[#allocation10 + $0x40] sm:$0xff]
        %v851 = vld [vmem:[#allocation10 + $0x48] sm:$0xff]
        %v852 = vld [vmem:[#allocation10 + $0x50] sm:$0xff]
        %v853 = vld [vmem:[#allocation10 + $0x58] sm:$0xff]
        %v854 = vld [vmem:[#allocation10 + $0x60] sm:$0xff]
        %v855 = vld [vmem:[#allocation10 + $0x68] sm:$0xff]
        %v856 = vld [vmem:[#allocation10 + $0x70] sm:$0xff]
        %v857 = vld [vmem:[#allocation10 + $0x78] sm:$0xff]
        %v858 = vld [vmem:[%s8] sm:$0x3]
        %v860 = vlaneseq
        %v861 = vshrl.u32 %v860, 7
        %v862 = vsub.s32 0, %v861
        %v863 = vrot.slane %v858, %v862
        %v864 = vlaneseq
        %v865 = vshrl.u32 %v864, 7
        %v866 = vsub.s32 1, %v865
        %v867 = vrot.slane %v858, %v866
        %v886 = vunpack.c.l.b16 %v842
        %v887 = vunpack.c.h.b16 %v842
        %v888 = vunpack.c.l.b16 %v843
        %v889 = vunpack.c.h.b16 %v843
        %v890 = vunpack.c.l.b16 %v844
        %v891 = vunpack.c.h.b16 %v844
        %v892 = vunpack.c.l.b16 %v845
        %v893 = vunpack.c.h.b16 %v845
        %v894 = vunpack.c.l.b16 %v846
        %v895 = vunpack.c.h.b16 %v846
        %v896 = vunpack.c.l.b16 %v847
        %v897 = vunpack.c.h.b16 %v847
        %v898 = vunpack.c.l.b16 %v848
        %v899 = vunpack.c.h.b16 %v848
        %v900 = vunpack.c.l.b16 %v849
        %v901 = vunpack.c.h.b16 %v849
        %v902 = vunpack.c.l.b16 %v850
        %v903 = vunpack.c.h.b16 %v850
        %v904 = vunpack.c.l.b16 %v851
        %v905 = vunpack.c.h.b16 %v851
        %v906 = vunpack.c.l.b16 %v852
        %v907 = vunpack.c.h.b16 %v852
        %v908 = vunpack.c.l.b16 %v853
        %v909 = vunpack.c.h.b16 %v853
        %v910 = vunpack.c.l.b16 %v854
        %v911 = vunpack.c.h.b16 %v854
        %v912 = vunpack.c.l.b16 %v855
        %v913 = vunpack.c.h.b16 %v855
        %v914 = vunpack.c.l.b16 %v856
        %v915 = vunpack.c.h.b16 %v856
        %v916 = vunpack.c.l.b16 %v857
        %v917 = vunpack.c.h.b16 %v857
        %v918 = vpack.c.b16 %v888, %v886
        %v919 = vpack.c.b16 %v889, %v887
        %v920 = vpack.c.b16 %v892, %v890
        %v921 = vpack.c.b16 %v893, %v891
        %v922 = vpack.c.b16 %v896, %v894
        %v923 = vpack.c.b16 %v897, %v895
        %v924 = vpack.c.b16 %v900, %v898
        %v925 = vpack.c.b16 %v901, %v899
        %v926 = vpack.c.b16 %v904, %v902
        %v927 = vpack.c.b16 %v905, %v903
        %v928 = vpack.c.b16 %v908, %v906
        %v929 = vpack.c.b16 %v909, %v907
        %v930 = vpack.c.b16 %v912, %v910
        %v931 = vpack.c.b16 %v913, %v911
        %v932 = vpack.c.b16 %v916, %v914
        %v933 = vpack.c.b16 %v917, %v915
        %950 = vmatprep.subr.bf16.mxu0 %v919
        %951 = vmatpush1.bf16.msra.mxu0 %v918
        %952 = vmatprep.subr.bf16.mxu0 %v921
        %953 = vmatpush1.bf16.msra.mxu0 %v920
        %954 = vmatprep.subr.bf16.mxu0 %v923
        %955 = vmatpush1.bf16.msra.mxu0 %v922
        %956 = vmatprep.subr.bf16.mxu0 %v925
        %957 = vmatpush1.bf16.msra.mxu0 %v924
        %958 = vmatprep.subr.bf16.mxu0 %v927
        %959 = vmatpush1.bf16.msra.mxu0 %v926
        %960 = vmatprep.subr.bf16.mxu0 %v929
        %961 = vmatpush1.bf16.msra.mxu0 %v928
        %962 = vmatprep.subr.bf16.mxu0 %v931
        %963 = vmatpush1.bf16.msra.mxu0 %v930
        %964 = vmatprep.subr.bf16.mxu0 %v933
        %965 = vmatpush1.bf16.msra.mxu0 %v932
        %966 = vmatprep.subr.bf16.mxu0 0
        %967 = vmatpush1.bf16.msra.mxu0 0
        %968 = vmatprep.subr.bf16.mxu0 0
        %969 = vmatpush1.bf16.msra.mxu0 0
        %970 = vmatprep.subr.bf16.mxu0 0
        %971 = vmatpush1.bf16.msra.mxu0 0
        %972 = vmatprep.subr.bf16.mxu0 0
        %973 = vmatpush1.bf16.msra.mxu0 0
        %974 = vmatprep.subr.bf16.mxu0 0
        %975 = vmatpush1.bf16.msra.mxu0 0
        %976 = vmatprep.subr.bf16.mxu0 0
        %977 = vmatpush1.bf16.msra.mxu0 0
        %978 = vmatprep.subr.bf16.mxu0 0
        %979 = vmatpush1.bf16.msra.mxu0 0
        %980 = vmatprep.subr.bf16.mxu0 0
        %981 = vmatpush1.bf16.msra.mxu0 0
        %982 = vmatprep.mubr.bf16.mxu0 0
        %983 = vmatmul.mubr.bf16.gmra.mrb[0].mxu0 %v686
        %v984 = vpop.f32.mrb[0].mxu0
        %v985 = vadd.f32 %v863, %v984
        %v986 = vpop.f32.mrb[0].mxu0
        %v987 = vadd.f32 %v867, %v986
        %v988 = vpop.f32.mrb[0].mxu0
        %v989 = vpop.f32.mrb[0].mxu0
        %990 = vdwg.mxu0
        %v991 = vadd.f32 %v985, %v840
        %v992 = vadd.f32 %v987, %v841
        %vm993 = vcmp.gt.f32.partialorder %v991, 0.0
        %vm994 = vcmp.gt.f32.partialorder %v992, 0.0
        %v995 = vmul.f32 %v991, 0.01
        %v996 = vmul.f32 %v992, 0.01
        %v997 = vsel %vm993, %v991, %v995
        %v998 = vsel %vm994, %v992, %v996
        %v999 = vpack.c.bf16 %v997, %v997
        %v1000 = vpack.c.bf16 %v998, %v998
        %v1001 = vld [vmem:[#allocation11] sm:$0xf]
        %v1002 = vld [vmem:[#allocation11 + $0x4] sm:$0xf]
        %v1003 = vld [vmem:[#allocation11 + $0x8] sm:$0xf]
        %v1004 = vld [vmem:[#allocation11 + $0xc] sm:$0xf]
        %v1005 = vld [vmem:[#allocation11 + $0x10] sm:$0xf]
        %v1006 = vld [vmem:[#allocation11 + $0x14] sm:$0xf]
        %v1007 = vld [vmem:[#allocation11 + $0x18] sm:$0xf]
        %v1008 = vld [vmem:[#allocation11 + $0x1c] sm:$0xf]
        %v1009 = vld [vmem:[#allocation11 + $0x20] sm:$0xf]
        %v1010 = vld [vmem:[#allocation11 + $0x24] sm:$0xf]
        %v1011 = vld [vmem:[#allocation11 + $0x28] sm:$0xf]
        %v1012 = vld [vmem:[#allocation11 + $0x2c] sm:$0xf]
        %v1013 = vld [vmem:[#allocation11 + $0x30] sm:$0xf]
        %v1014 = vld [vmem:[#allocation11 + $0x34] sm:$0xf]
        %v1015 = vld [vmem:[#allocation11 + $0x38] sm:$0xf]
        %v1016 = vld [vmem:[#allocation11 + $0x3c] sm:$0xf]
        %v1017 = vld [vmem:[#allocation11 + $0x40] sm:$0xf]
        %v1018 = vld [vmem:[#allocation11 + $0x44] sm:$0xf]
        %v1019 = vld [vmem:[#allocation11 + $0x48] sm:$0xf]
        %v1020 = vld [vmem:[#allocation11 + $0x4c] sm:$0xf]
        %v1021 = vld [vmem:[#allocation11 + $0x50] sm:$0xf]
        %v1022 = vld [vmem:[#allocation11 + $0x54] sm:$0xf]
        %v1023 = vld [vmem:[#allocation11 + $0x58] sm:$0xf]
        %v1024 = vld [vmem:[#allocation11 + $0x5c] sm:$0xf]
        %v1025 = vld [vmem:[#allocation11 + $0x60] sm:$0xf]
        %v1026 = vld [vmem:[#allocation11 + $0x64] sm:$0xf]
        %v1027 = vld [vmem:[#allocation11 + $0x68] sm:$0xf]
        %v1028 = vld [vmem:[#allocation11 + $0x6c] sm:$0xf]
        %v1029 = vld [vmem:[#allocation11 + $0x70] sm:$0xf]
        %v1030 = vld [vmem:[#allocation11 + $0x74] sm:$0xf]
        %v1031 = vld [vmem:[#allocation11 + $0x78] sm:$0xf]
        %v1032 = vld [vmem:[#allocation11 + $0x7c] sm:$0xf]
        %v1033 = vld [vmem:[%s10] sm:$0x1]
        %v1035 = vlaneseq
        %v1036 = vshrl.u32 %v1035, 7
        %v1037 = vsub.s32 0, %v1036
        %v1038 = vrot.slane %v1033, %v1037
        %v1072 = vunpack.c.l.b16 %v1001
        %v1073 = vunpack.c.l.b16 %v1002
        %v1074 = vunpack.c.l.b16 %v1003
        %v1075 = vunpack.c.l.b16 %v1004
        %v1076 = vunpack.c.l.b16 %v1005
        %v1077 = vunpack.c.l.b16 %v1006
        %v1078 = vunpack.c.l.b16 %v1007
        %v1079 = vunpack.c.l.b16 %v1008
        %v1080 = vunpack.c.l.b16 %v1009
        %v1081 = vunpack.c.l.b16 %v1010
        %v1082 = vunpack.c.l.b16 %v1011
        %v1083 = vunpack.c.l.b16 %v1012
        %v1084 = vunpack.c.l.b16 %v1013
        %v1085 = vunpack.c.l.b16 %v1014
        %v1086 = vunpack.c.l.b16 %v1015
        %v1087 = vunpack.c.l.b16 %v1016
        %v1088 = vunpack.c.l.b16 %v1017
        %v1089 = vunpack.c.l.b16 %v1018
        %v1090 = vunpack.c.l.b16 %v1019
        %v1091 = vunpack.c.l.b16 %v1020
        %v1092 = vunpack.c.l.b16 %v1021
        %v1093 = vunpack.c.l.b16 %v1022
        %v1094 = vunpack.c.l.b16 %v1023
        %v1095 = vunpack.c.l.b16 %v1024
        %v1096 = vunpack.c.l.b16 %v1025
        %v1097 = vunpack.c.l.b16 %v1026
        %v1098 = vunpack.c.l.b16 %v1027
        %v1099 = vunpack.c.l.b16 %v1028
        %v1100 = vunpack.c.l.b16 %v1029
        %v1101 = vunpack.c.l.b16 %v1030
        %v1102 = vunpack.c.l.b16 %v1031
        %v1103 = vunpack.c.l.b16 %v1032
        %v1104 = vpack.c.b16 %v1073, %v1072
        %v1105 = vpack.c.b16 %v1075, %v1074
        %v1106 = vpack.c.b16 %v1077, %v1076
        %v1107 = vpack.c.b16 %v1079, %v1078
        %v1108 = vpack.c.b16 %v1081, %v1080
        %v1109 = vpack.c.b16 %v1083, %v1082
        %v1110 = vpack.c.b16 %v1085, %v1084
        %v1111 = vpack.c.b16 %v1087, %v1086
        %v1112 = vpack.c.b16 %v1089, %v1088
        %v1113 = vpack.c.b16 %v1091, %v1090
        %v1114 = vpack.c.b16 %v1093, %v1092
        %v1115 = vpack.c.b16 %v1095, %v1094
        %v1116 = vpack.c.b16 %v1097, %v1096
        %v1117 = vpack.c.b16 %v1099, %v1098
        %v1118 = vpack.c.b16 %v1101, %v1100
        %v1119 = vpack.c.b16 %v1103, %v1102
        %1136 = vmatprep.subr.bf16.mxu0 0
        %1137 = vmatpush1.bf16.msra.mxu0 %v1104
        %1138 = vmatprep.subr.bf16.mxu0 0
        %1139 = vmatpush1.bf16.msra.mxu0 %v1105
        %1140 = vmatprep.subr.bf16.mxu0 0
        %1141 = vmatpush1.bf16.msra.mxu0 %v1106
        %1142 = vmatprep.subr.bf16.mxu0 0
        %1143 = vmatpush1.bf16.msra.mxu0 %v1107
        %1144 = vmatprep.subr.bf16.mxu0 0
        %1145 = vmatpush1.bf16.msra.mxu0 %v1108
        %1146 = vmatprep.subr.bf16.mxu0 0
        %1147 = vmatpush1.bf16.msra.mxu0 %v1109
        %1148 = vmatprep.subr.bf16.mxu0 0
        %1149 = vmatpush1.bf16.msra.mxu0 %v1110
        %1150 = vmatprep.subr.bf16.mxu0 0
        %1151 = vmatpush1.bf16.msra.mxu0 %v1111
        %1152 = vmatprep.subr.bf16.mxu0 0
        %1153 = vmatpush1.bf16.msra.mxu0 %v1112
        %1154 = vmatprep.subr.bf16.mxu0 0
        %1155 = vmatpush1.bf16.msra.mxu0 %v1113
        %1156 = vmatprep.subr.bf16.mxu0 0
        %1157 = vmatpush1.bf16.msra.mxu0 %v1114
        %1158 = vmatprep.subr.bf16.mxu0 0
        %1159 = vmatpush1.bf16.msra.mxu0 %v1115
        %1160 = vmatprep.subr.bf16.mxu0 0
        %1161 = vmatpush1.bf16.msra.mxu0 %v1116
        %1162 = vmatprep.subr.bf16.mxu0 0
        %1163 = vmatpush1.bf16.msra.mxu0 %v1117
        %1164 = vmatprep.subr.bf16.mxu0 0
        %1165 = vmatpush1.bf16.msra.mxu0 %v1118
        %1166 = vmatprep.subr.bf16.mxu0 0
        %1167 = vmatpush1.bf16.msra.mxu0 %v1119
        %1168 = vmatprep.mubr.bf16.mxu0 %v1000
        %1169 = vmatmul.mubr.bf16.gmra.mrb[0].mxu0 %v999
        %v1170 = vpop.f32.mrb[0].mxu0
        %v1171 = vadd.f32 %v1038, %v1170
        %v1172 = vpop.f32.mrb[0].mxu0
        %v1173 = vpop.f32.mrb[0].mxu0
        %v1174 = vpop.f32.mrb[0].mxu0
        %1175 = vdwg.mxu0
        %v1176 = vmax.f32 %v1171, 0.0
        %1177 = vst [vmem:[%s474] sm:$0xff] %v1176
        %s1178 = sand.u32 %s275, 1
        %s1179 = scalar_lea.sflag [#allocation4], %s1178
        %s1180 = sand.u32 %s275, 1
        %s1181 = smul.addr %s1180, 8
        %s1182 = scalar_lea.vmem [#allocation13], %s1181
        // Predicated region
        $region89: #{tpu_custom_call.1} parent=63 // pred_check
          %p1183 = pneg %p285
        $region90: #{tpu_custom_call.1} parent=63 // pred_check_branch
          %1185 = sbr.rel (%p1183) target = $region92
        $region91: #{tpu_custom_call.1} parent=63 // pred_region
          %s1187 = ssub.s32 128, 128
          %1188 = vsyncadd %s1179, %s1187
          %s1189 = smul.addr %s31, 128
          %s1190 = scalar_lea.hbm %s11, %s1189
          %s1192 = sshll.u32 %s1182, 4
          %s1193 = int_to_ptr.vmem [resolvable:$true] %s1192
          %1195 = dma.vmem_to_hbm [thread:$0]  %s1193, 128, %s1190, %s1179
        $region92: #{tpu_custom_call.1} parent=63 // pred_fallthru
          _
      $region64: #{tpu_custom_call.1} parent=5 // pred_fallthru
        _
      %p1196 = scmp.le.s32.totalorder 2, %s26
      // Predicated region
      $region93: #{tpu_custom_call.1} parent=5 // pred_check
        %p1197 = pneg %p1196
      $region94: #{tpu_custom_call.1} parent=5 // pred_check_branch
        %1199 = sbr.rel (%p1197) target = $region96
      $region95: #{tpu_custom_call.1} parent=5 // pred_region
        %s1200 = ssub.s32 %s26, 2
        // Predicated region
        $region97: #{tpu_custom_call.1} parent=95 // pred_check
          %p1201 = pneg %p291
        $region98: #{tpu_custom_call.1} parent=95 // pred_check_branch
          %1203 = sbr.rel (%p1201) target = $region100
        $region99: #{tpu_custom_call.1} parent=95 // pred_region
          %s1204 = sand.u32 %s276, 1
          %s1205 = scalar_lea.sflag [#allocation4], %s1204
          %s1206 = sand.u32 %s276, 1
          %s1207 = smul.addr %s1206, 8
          %s1208 = scalar_lea.vmem [#allocation13], %s1207
          %1209 = dma.done %s1205, 128
        $region100: #{tpu_custom_call.1} parent=95 // pred_fallthru
          _
      $region96: #{tpu_custom_call.1} parent=5 // pred_fallthru
        _
    $region6: #{tpu_custom_call.1} parent=1 // loop_footer
      %s30 = sadd.s32 1, %s26
    $region7: #{tpu_custom_call.1} parent=1 // loop_footer_branch
      %25 = sbr.rel target = $region3
    $region8: #{tpu_custom_call.1} parent=1 // loop_exit
      _
    %1210 = vsyncpa [#allocation3], 1
    %s1211 = scalar_lea.sflag [#allocation3], 1
    %1212 = vsyncpa %s1211, 1
    %1213 = vsyncpa [#allocation6], 1
    %1214 = vsyncpa [#allocation9], 1
    %1215 = vsyncpa [#allocation12], 1
    %1216 = vsyncpa [#allocation4], 1
    %s1217 = scalar_lea.sflag [#allocation4], 1
    %1218 = vsyncpa %s1217, 1

</llo_original>
